<compile_context>
chip_gen: v6e
topology: v6e:2x2x1
jax: 0.10.0
libtpu: 0.0.40
codegen_flags: <defaults>
</compile_context>

<pallas_src>
import jax
import jax.numpy as jnp
from jax.experimental import pallas as pl
from jax.experimental.pallas import tpu as pltpu


def _round_up(x, m):
    return ((x + m - 1) // m) * m


def critic_kernel(x_ref, w1_ref, b1_ref, w2_ref, b2_ref, o_ref):
    # Hidden layer: x @ W1 + b1, ReLU  (MXU matmul, f32 accumulation).
    h = jnp.dot(x_ref[...], w1_ref[...], preferred_element_type=jnp.float32)
    h = jnp.maximum(h + b1_ref[...], 0.0)
    # Value head: VPU multiply + lane reduction (avoids a 128-wide zero-padded MXU
    # matmul), then relayout to a lane-dense (1, TB) row for an unmasked store.
    v = jnp.sum(h * w2_ref[...], axis=-1) + b2_ref[0, 0]          # (TB,)
    o_ref[...] = v.reshape(1, -1).astype(o_ref.dtype)             # lane-dense store


def critic_forward(state, w1, b1, w2, b2, *, tb_max=1024, compute_dtype=jnp.float32):
    """state: (B, D). w1: (D, D), b1: (D,), w2: (D, 1), b2: (1,).

    Returns state2value(state).squeeze()  ->  shape (B,)  (0-d if B == 1).
    compute_dtype=jnp.bfloat16 runs the MXU matmul in bf16 (f32 accumulation).
    """
    B, D = state.shape
    assert w1.shape == (D, D) and b1.shape == (D,)
    assert w2.shape == (D, 1) and b2.shape == (1,)
    assert tb_max % 256 == 0

    # Batch tile selection:
    #   * small B  -> one full-extent tile (no padding, no alignment constraints),
    #   * large B  -> >= 2 tiles, each a multiple of 256 (MXU-aligned M passes and a
    #                 128-lane-aligned output row block) so the "parallel" batch
    #                 axis actually shards across both v7x TensorCores.
    if B <= 256:
        TB = B
    else:
        TB = min(tb_max, _round_up(pl.cdiv(B, 2), 256))
    n_tiles = pl.cdiv(B, TB)            # ragged last tile allowed; no jnp.pad

    x = state.astype(compute_dtype)
    w1c = w1.astype(compute_dtype)
    b1_row = b1.reshape(1, D).astype(jnp.float32)    # added to the f32 accumulator
    w2_row = w2.reshape(D)[None, :].astype(jnp.float32)
    b2_s = b2.reshape(1, 1).astype(jnp.float32)      # SMEM scalar

    itemsize = jnp.dtype(compute_dtype).itemsize
    vmem_need = (2 * TB * D * itemsize        # x tile, double-buffered
                 + 2 * D * D * itemsize       # resident W1 (2 buffers by default)
                 + 4 * 2 * D * 4              # b1 / w2 rows
                 + 2 * TB * 4)                # output row, double-buffered
    vmem_limit = int(min(max(2 * vmem_need, 32 << 20), 64 << 20))

    cost = pl.CostEstimate(
        flops=2 * B * D * D + 3 * B * D,
        transcendentals=0,
        bytes_accessed=itemsize * (B * D + D * D) + 4 * (2 * D + 1 + B),
    )

    out_row = pl.pallas_call(
        critic_kernel,
        out_shape=jax.ShapeDtypeStruct((1, n_tiles * TB), jnp.float32),
        grid=(n_tiles,),
        in_specs=[
            pl.BlockSpec((TB, D), lambda i: (i, 0)),        # x: tiled over batch
            pl.BlockSpec((D, D), lambda i: (0, 0)),         # W1: VMEM-resident
            pl.BlockSpec((1, D), lambda i: (0, 0)),         # b1 row
            pl.BlockSpec((1, D), lambda i: (0, 0)),         # w2 row (value head)
            pl.BlockSpec((1, 1), lambda i: (0, 0),
                         memory_space=pltpu.MemorySpace.SMEM),  # b2 scalar
        ],
        out_specs=pl.BlockSpec((1, TB), lambda i: (0, i)),   # lane-dense output row
        compiler_params=pltpu.CompilerParams(
            dimension_semantics=("parallel",),               # batch tiles independent
            vmem_limit_bytes=vmem_limit,
        ),
        cost_estimate=cost,
    )(x, w1c, b1_row, w2_row, b2_s)

    # Drop ragged-tile garbage entries, then replicate torch's .squeeze().
    return out_row.reshape(-1)[:B].squeeze()


def reference_forward(state, w1, b1, w2, b2):
    h = jnp.maximum(state @ w1 + b1, 0.0)
    return (h @ w2 + b2).squeeze()


if __name__ == "__main__":
    key = jax.random.PRNGKey(0)
    k_x, k_w1, k_b1, k_w2, k_b2, k_x2 = jax.random.split(key, 6)

    D = 128  # rnn_dim (module default 512, shrunk for the test)
    bound = 1.0 / (D ** 0.5)
    w1 = jax.random.uniform(k_w1, (D, D), minval=-bound, maxval=bound, dtype=jnp.float32)
    b1 = jax.random.uniform(k_b1, (D,), minval=-bound, maxval=bound, dtype=jnp.float32)
    w2 = jax.random.uniform(k_w2, (D, 1), minval=-bound, maxval=bound, dtype=jnp.float32)
    b2 = jax.random.uniform(k_b2, (1,), minval=-bound, maxval=bound, dtype=jnp.float32)

    # Small batch: single full-extent tile, f32 path, tight tolerance.
    B = 8
    state = jax.random.normal(k_x, (B, D), dtype=jnp.float32)
    out = jax.block_until_ready(critic_forward(state, w1, b1, w2, b2))
    ref = reference_forward(state, w1, b1, w2, b2)
    assert out.shape == (B,), out.shape
    assert jnp.allclose(out, ref, atol=1e-5, rtol=1e-5), (out, ref)

    # Batch that does not divide the tile size: exercises the multi-tile grid,
    # the ragged last tile (no padding), and the lane-dense multi-block output.
    B2 = 300
    state2 = jax.random.normal(k_x2, (B2, D), dtype=jnp.float32)
    out2 = jax.block_until_ready(critic_forward(state2, w1, b1, w2, b2))
    ref2 = reference_forward(state2, w1, b1, w2, b2)
    assert out2.shape == (B2,), out2.shape
    assert jnp.allclose(out2, ref2, atol=1e-5, rtol=1e-5)

    # bf16 MXU path (f32 accumulation): looser tolerance vs. the f32 reference.
    out_bf = jax.block_until_ready(
        critic_forward(state2, w1, b1, w2, b2, compute_dtype=jnp.bfloat16))
    assert out_bf.shape == (B2,), out_bf.shape
    assert jnp.allclose(out_bf, ref2, atol=3e-2, rtol=3e-2)

    print("KERNEL_OK")
</pallas_src>

<mosaic_0001>
module attributes {stable_mosaic.version = 11 : i64} {
  func.func @critic_kernel(%arg0: i32, %arg1: memref<8x128xf32, #tpu.memory_space<vmem>>, %arg2: memref<128x128xf32, #tpu.memory_space<vmem>>, %arg3: memref<1x128xf32, #tpu.memory_space<vmem>>, %arg4: memref<1x128xf32, #tpu.memory_space<vmem>>, %arg5: memref<1x1xf32, #tpu.memory_space<smem>>, %arg6: memref<1x8xf32, #tpu.memory_space<vmem>>) attributes {dimension_semantics = [#tpu.dimension_semantics<parallel>], iteration_bounds = array<i64: 1>, scalar_prefetch = 0 : i64, scratch_operands = 0 : i64, tpu.core_type = #tpu.core_type<tc>, window_params = [{transform_indices = @transform_0, window_bounds = array<i64: 8, 128>}, {pipeline_mode = #tpu.pipeline_mode<synchronous>, transform_indices = @transform_1, window_bounds = array<i64: 128, 128>}, {pipeline_mode = #tpu.pipeline_mode<synchronous>, transform_indices = @transform_2, window_bounds = array<i64: 1, 128>}, {pipeline_mode = #tpu.pipeline_mode<synchronous>, transform_indices = @transform_3, window_bounds = array<i64: 1, 128>}, {transform_indices = @transform_4, window_bounds = array<i64: 1, 1>}, {transform_indices = @transform_5, window_bounds = array<i64: 1, 8>}]} {
    %c0 = arith.constant 0 : index
    %c0_0 = arith.constant 0 : index
    %0 = vector.load %arg1[%c0, %c0_0] : memref<8x128xf32, #tpu.memory_space<vmem>>, vector<8x128xf32>
    %c0_1 = arith.constant 0 : index
    %c0_2 = arith.constant 0 : index
    %1 = vector.load %arg2[%c0_1, %c0_2] : memref<128x128xf32, #tpu.memory_space<vmem>>, vector<128x128xf32>
    %cst = arith.constant dense<0.000000e+00> : vector<8x128xf32>
    %2 = tpu.matmul %0, %1, %cst {dimension_numbers = #tpu.dot_dimension_numbers<[1], [0], [0], [1], [0, 0, 1, 1], [], []>} : vector<8x128xf32>, vector<128x128xf32>, vector<8x128xf32> -> vector<8x128xf32>
    %c0_3 = arith.constant 0 : index
    %c0_4 = arith.constant 0 : index
    %3 = vector.load %arg3[%c0_3, %c0_4] : memref<1x128xf32, #tpu.memory_space<vmem>>, vector<1x128xf32>
    %4 = vector.broadcast %3 : vector<1x128xf32> to vector<8x128xf32>
    %5 = arith.addf %2, %4 : vector<8x128xf32>
    %cst_5 = arith.constant 0.000000e+00 : f32
    %6 = vector.broadcast %cst_5 : f32 to vector<8x128xf32>
    %7 = arith.maximumf %5, %6 : vector<8x128xf32>
    %c0_6 = arith.constant 0 : index
    %c0_7 = arith.constant 0 : index
    %8 = vector.load %arg4[%c0_6, %c0_7] : memref<1x128xf32, #tpu.memory_space<vmem>>, vector<1x128xf32>
    %9 = vector.broadcast %8 : vector<1x128xf32> to vector<8x128xf32>
    %10 = arith.mulf %7, %9 : vector<8x128xf32>
    %cst_8 = arith.constant dense<0.000000e+00> : vector<8xf32>
    %11 = vector.multi_reduction <add>, %10, %cst_8 [1] : vector<8x128xf32> to vector<8xf32>
    %c0_9 = arith.constant 0 : index
    %c0_10 = arith.constant 0 : index
    %12 = memref.load %arg5[%c0_9, %c0_10] : memref<1x1xf32, #tpu.memory_space<smem>>
    %13 = vector.broadcast %12 : f32 to vector<8xf32>
    %14 = arith.addf %11, %13 : vector<8xf32>
    %15 = vector.shape_cast %14 : vector<8xf32> to vector<1x8xf32>
    %c0_11 = arith.constant 0 : index
    %c0_12 = arith.constant 0 : index
    %16 = vector.load %arg6[%c0_11, %c0_12] : memref<1x8xf32, #tpu.memory_space<vmem>>, vector<1x8xf32>
    tpu.vector_store %arg6[%c0_11, %c0_12], %15 {strides = array<i32>} : memref<1x8xf32, #tpu.memory_space<vmem>>, vector<1x8xf32>,
    return
  }
  func.func @transform_0(%arg0: i32) -> (i32, i32) {
    %c0_i32 = arith.constant 0 : i32
    %c0_i32_0 = arith.constant 0 : i32
    return %arg0, %c0_i32 : i32, i32
  }
  func.func @transform_1(%arg0: i32) -> (i32, i32) {
    %c0_i32 = arith.constant 0 : i32
    %c0_i32_0 = arith.constant 0 : i32
    %c0_i32_1 = arith.constant 0 : i32
    return %c0_i32, %c0_i32_0 : i32, i32
  }
  func.func @transform_2(%arg0: i32) -> (i32, i32) {
    %c0_i32 = arith.constant 0 : i32
    %c0_i32_0 = arith.constant 0 : i32
    %c0_i32_1 = arith.constant 0 : i32
    return %c0_i32, %c0_i32_0 : i32, i32
  }
  func.func @transform_3(%arg0: i32) -> (i32, i32) {
    %c0_i32 = arith.constant 0 : i32
    %c0_i32_0 = arith.constant 0 : i32
    %c0_i32_1 = arith.constant 0 : i32
    return %c0_i32, %c0_i32_0 : i32, i32
  }
  func.func @transform_4(%arg0: i32) -> (i32, i32) {
    %c0_i32 = arith.constant 0 : i32
    %c0_i32_0 = arith.constant 0 : i32
    %c0_i32_1 = arith.constant 0 : i32
    return %c0_i32, %c0_i32_0 : i32, i32
  }
  func.func @transform_5(%arg0: i32) -> (i32, i32) {
    %c0_i32 = arith.constant 0 : i32
    %c0_i32_0 = arith.constant 0 : i32
    return %c0_i32, %arg0 : i32, i32
  }
}

</mosaic_0001>

<llo_original>
// kernel: tpu_custom_call.1
$region0: #{tpu_custom_call.1}
  #allocation0 [shape = 'u32[]', space=smem, size = 0x4, offset = 0x4, fixed_abs, tag = 'smem constant byte address 0x4 - core index']
  #allocation1 [shape = 'u32[144,128]{1,0:T(1,128)}', space=vmem, size = 0x12000, scoped, tag = 'internal scratch']
  #allocation2 [shape = 'f32[1,1]{1,0:T(1,128)S(6)}', space=smem, size = 0x200, scoped, tag = 'scoped memory for tpu_custom_call.1']
  %s0 = inlined_call_operand.hbm [shape: f32[8,128], index: 0, kind: input, shape index: {}]
  %s1 = inlined_call_operand.hbm [shape: f32[128,128], index: 1, kind: input, shape index: {}]
  %s2 = inlined_call_operand.vmem [shape: f32[1,128], index: 2, kind: input, shape index: {}]
  %s3 = inlined_call_operand.vmem [shape: f32[1,128], index: 3, kind: input, shape index: {}]
  %s4 = inlined_call_operand.<no memory space> [shape: f32[1,1], index: 4, kind: input, shape index: {}]
  %s5 = inlined_call_operand.hbm [shape: f32[1,8], index: 5, kind: output, shape index: {}]
  %s6 = sld [smem:[#allocation0]]
  $region38: #{tpu_custom_call.1} parent=0
    _
  %s8 = ssub.s32 1, %s6
  %s9 = scalar_select 0, %s8, %s6
  %10 = sst [smem:[#allocation2]] %s4
  $region1: #{tpu_custom_call.1} parent=0
    #allocation3 [shape = 'u8[4096]{0}', space=vmem, size = 0x1000, scoped, tag = 'input window, operand 0, single buffered']
    #allocation4 [shape = 's32[1]{0}', space=sflag, size = 0x4, scoped, tag = 'scoped memory for tpu_custom_call.1']
    #allocation5 [shape = 's32[1]{0}', space=sflag, size = 0x4, scoped, tag = 'scoped memory for tpu_custom_call.1']
    #allocation6 [shape = 'u8[65536]{0}', space=vmem, size = 0x10000, scoped, tag = 'input window, operand 1, single buffered']
    #allocation7 [shape = 's32[1]{0}', space=sflag, size = 0x4, scoped, tag = 'scoped memory for tpu_custom_call.1']
    #allocation8 [shape = 'u8[512]{0}', space=vmem, size = 0x400, scoped, tag = 'output window, operand 0, single buffered']
    %11 = vsyncpa [#allocation4], 0
    %12 = vsyncpa [#allocation7], 0
    %13 = vsyncpa [#allocation5], 0
    // Predicated region
    $region2: #{tpu_custom_call.1} parent=1 // pred_check
      _
    $region3: #{tpu_custom_call.1} parent=1 // pred_check_branch
      %15 = sbr.rel (0) target = $region5
    $region4: #{tpu_custom_call.1} parent=1 // pred_region
      %s17 = ssub.s32 128, 128
      %18 = vsyncadd [#allocation4], %s17
      %s20 = sshll.u32 [#allocation3], 4
      %s21 = int_to_ptr.vmem [resolvable:$true] %s20
      %23 = dma.hbm_to_vmem [thread:$0]  %s0, 128, %s21, [#allocation4]
    $region5: #{tpu_custom_call.1} parent=1 // pred_fallthru
      _
    // Predicated region
    $region6: #{tpu_custom_call.1} parent=1 // pred_check
      _
    $region7: #{tpu_custom_call.1} parent=1 // pred_check_branch
      %25 = sbr.rel (0) target = $region9
    $region8: #{tpu_custom_call.1} parent=1 // pred_region
      %s27 = ssub.s32 2048, 2048
      %28 = vsyncadd [#allocation7], %s27
      %s29 = sshll.u32 [#allocation6], 4
      %s30 = int_to_ptr.vmem [resolvable:$true] %s29
      %35 = dma.hbm_to_vmem [thread:$0]  %s1, 2048, %s30, [#allocation7], 128, 128, 8
    $region9: #{tpu_custom_call.1} parent=1 // pred_fallthru
      _
    // Predicated region
    $region10: #{tpu_custom_call.1} parent=1 // pred_check
      _
    $region11: #{tpu_custom_call.1} parent=1 // pred_check_branch
      %37 = sbr.rel (0) target = $region13
    $region12: #{tpu_custom_call.1} parent=1 // pred_region
      _
    $region13: #{tpu_custom_call.1} parent=1 // pred_fallthru
      _
    // Predicated region
    $region14: #{tpu_custom_call.1} parent=1 // pred_check
      _
    $region15: #{tpu_custom_call.1} parent=1 // pred_check_branch
      %39 = sbr.rel (0) target = $region17
    $region16: #{tpu_custom_call.1} parent=1 // pred_region
      _
    $region17: #{tpu_custom_call.1} parent=1 // pred_fallthru
      _
    // Predicated region
    $region18: #{tpu_custom_call.1} parent=1 // pred_check
      _
    $region19: #{tpu_custom_call.1} parent=1 // pred_check_branch
      %41 = sbr.rel (0) target = $region21
    $region20: #{tpu_custom_call.1} parent=1 // pred_region
      _
    $region21: #{tpu_custom_call.1} parent=1 // pred_fallthru
      _
    // Predicated region
    $region22: #{tpu_custom_call.1} parent=1 // pred_check
      _
    $region23: #{tpu_custom_call.1} parent=1 // pred_check_branch
      %43 = sbr.rel (0) target = $region25
    $region24: #{tpu_custom_call.1} parent=1 // pred_region
      %44 = dma.done [#allocation4], 128
    $region25: #{tpu_custom_call.1} parent=1 // pred_fallthru
      _
    // Predicated region
    $region26: #{tpu_custom_call.1} parent=1 // pred_check
      _
    $region27: #{tpu_custom_call.1} parent=1 // pred_check_branch
      %46 = sbr.rel (0) target = $region29
    $region28: #{tpu_custom_call.1} parent=1 // pred_region
      %47 = dma.done [#allocation7], 2048
    $region29: #{tpu_custom_call.1} parent=1 // pred_fallthru
      _
    %v48 = vld [vmem:[#allocation3] sm:$0xff]
    %v49 = vld [vmem:[#allocation6] sm:$0xff]
    %v50 = vld [vmem:[#allocation6 + $0x8] sm:$0xff]
    %v51 = vld [vmem:[#allocation6 + $0x10] sm:$0xff]
    %v52 = vld [vmem:[#allocation6 + $0x18] sm:$0xff]
    %v53 = vld [vmem:[#allocation6 + $0x20] sm:$0xff]
    %v54 = vld [vmem:[#allocation6 + $0x28] sm:$0xff]
    %v55 = vld [vmem:[#allocation6 + $0x30] sm:$0xff]
    %v56 = vld [vmem:[#allocation6 + $0x38] sm:$0xff]
    %v57 = vld [vmem:[#allocation6 + $0x40] sm:$0xff]
    %v58 = vld [vmem:[#allocation6 + $0x48] sm:$0xff]
    %v59 = vld [vmem:[#allocation6 + $0x50] sm:$0xff]
    %v60 = vld [vmem:[#allocation6 + $0x58] sm:$0xff]
    %v61 = vld [vmem:[#allocation6 + $0x60] sm:$0xff]
    %v62 = vld [vmem:[#allocation6 + $0x68] sm:$0xff]
    %v63 = vld [vmem:[#allocation6 + $0x70] sm:$0xff]
    %v64 = vld [vmem:[#allocation6 + $0x78] sm:$0xff]
    %v65 = vld [vmem:[%s2] sm:$0x1]
    %v67 = vlaneseq
    %v68 = vshrl.u32 %v67, 7
    %v69 = vsub.s32 0, %v68
    %v70 = vrot.slane %v65, %v69
    %72 = vmatprep.subr.mxu0 0.0
    %73 = vmatpush1.msra.mxu0 %v64
    %74 = vmatprep.subr.mxu0 0.0
    %75 = vmatpush1.msra.mxu0 %v63
    %76 = vmatprep.subr.mxu0 0.0
    %77 = vmatpush1.msra.mxu0 %v62
    %78 = vmatprep.subr.mxu0 0.0
    %79 = vmatpush1.msra.mxu0 %v61
    %80 = vmatprep.subr.mxu0 0.0
    %81 = vmatpush1.msra.mxu0 %v60
    %82 = vmatprep.subr.mxu0 0.0
    %83 = vmatpush1.msra.mxu0 %v59
    %84 = vmatprep.subr.mxu0 0.0
    %85 = vmatpush1.msra.mxu0 %v58
    %86 = vmatprep.subr.mxu0 0.0
    %87 = vmatpush1.msra.mxu0 %v57
    %88 = vmatprep.subr.mxu0 0.0
    %89 = vmatpush1.msra.mxu0 %v56
    %90 = vmatprep.subr.mxu0 0.0
    %91 = vmatpush1.msra.mxu0 %v55
    %92 = vmatprep.subr.mxu0 0.0
    %93 = vmatpush1.msra.mxu0 %v54
    %94 = vmatprep.subr.mxu0 0.0
    %95 = vmatpush1.msra.mxu0 %v53
    %96 = vmatprep.subr.mxu0 0.0
    %97 = vmatpush1.msra.mxu0 %v52
    %98 = vmatprep.subr.mxu0 0.0
    %99 = vmatpush1.msra.mxu0 %v51
    %100 = vmatprep.subr.mxu0 0.0
    %101 = vmatpush1.msra.mxu0 %v50
    %102 = vmatprep.subr.mxu0 0.0
    %103 = vmatpush1.msra.mxu0 %v49
    %104 = vmatprep.subr.mxu0 0.0
    %105 = vmatpush2.msra.mxu0 0.0
    %106 = vmatprep.subr.mxu0 0.0
    %107 = vmatpush2.msra.mxu0 0.0
    %108 = vmatprep.subr.mxu0 0.0
    %109 = vmatpush2.msra.mxu0 0.0
    %110 = vmatprep.subr.mxu0 0.0
    %111 = vmatpush2.msra.mxu0 0.0
    %112 = vmatprep.subr.mxu0 0.0
    %113 = vmatpush2.msra.mxu0 0.0
    %114 = vmatprep.subr.mxu0 0.0
    %115 = vmatpush2.msra.mxu0 0.0
    %116 = vmatprep.subr.mxu0 0.0
    %117 = vmatpush2.msra.mxu0 0.0
    %118 = vmatprep.subr.mxu0 0.0
    %119 = vmatpush2.msra.mxu0 0.0
    %120 = vmatprep.subr.mxu0 0.0
    %121 = vmatpush2.msra.mxu0 0.0
    %122 = vmatprep.subr.mxu0 0.0
    %123 = vmatpush2.msra.mxu0 0.0
    %124 = vmatprep.subr.mxu0 0.0
    %125 = vmatpush2.msra.mxu0 0.0
    %126 = vmatprep.subr.mxu0 0.0
    %127 = vmatpush2.msra.mxu0 0.0
    %128 = vmatprep.subr.mxu0 0.0
    %129 = vmatpush2.msra.mxu0 0.0
    %130 = vmatprep.subr.mxu0 0.0
    %131 = vmatpush2.msra.mxu0 0.0
    %132 = vmatprep.subr.mxu0 0.0
    %133 = vmatpush2.msra.mxu0 0.0
    %134 = vmatprep.subr.mxu0 0.0
    %135 = vmatpush2.msra.mxu0 0.0
    %136 = vmatprep.mubr.f32.mxu0 0.0
    %137 = vmatmul.mubr.f32.gmra.mxu0 %v48
    %v138 = vpop.f32.mrf.mxu0
    %v139 = vadd.f32 %v70, %v138
    %v140 = vpop.f32.mrf.mxu0
    %141 = vdwg.mxu0
    %v142 = vmax.f32 %v139, 0.0
    %v143 = vld [vmem:[%s3] sm:$0x1]
    %v145 = vlaneseq
    %v146 = vshrl.u32 %v145, 7
    %v147 = vsub.s32 0, %v146
    %v148 = vrot.slane %v143, %v147
    %v150 = vmul.f32 %v142, %v148
    %151 = vadd.xlane.f32.xlu0 %v150
    %v152 = vpop.xlane.xlu0 %151
    %s153 = sld [smem:[#allocation2]]
    %v154 = vstv %s153
    %v155 = vadd.f32 %v152, %v154
    %v157 = vlaneseq
    %v158 = vand.u32 %v157, 127
    %v159 = vlaneseq
    %v160 = vshrl.u32 %v159, 7
    %v161 = vsub.s32 %v158, %v160
    %v162 = vrot.slane %v155, %v161
    %vm164 = vcmask 57344
    %165 = vst.msk [vmem:[#allocation8] sm:$0x1] %vm164, %v162
    // Predicated region
    $region30: #{tpu_custom_call.1} parent=1 // pred_check
      _
    $region31: #{tpu_custom_call.1} parent=1 // pred_check_branch
      %167 = sbr.rel (0) target = $region33
    $region32: #{tpu_custom_call.1} parent=1 // pred_region
      %s169 = ssub.s32 16, 16
      %170 = vsyncadd [#allocation5], %s169
      %s172 = sshll.u32 [#allocation8], 4
      %s173 = int_to_ptr.vmem [resolvable:$true] %s172
      %175 = dma.vmem_to_hbm [thread:$0]  %s173, 16, %s5, [#allocation5]
    $region33: #{tpu_custom_call.1} parent=1 // pred_fallthru
      _
    // Predicated region
    $region34: #{tpu_custom_call.1} parent=1 // pred_check
      _
    $region35: #{tpu_custom_call.1} parent=1 // pred_check_branch
      %177 = sbr.rel (0) target = $region37
    $region36: #{tpu_custom_call.1} parent=1 // pred_region
      %178 = dma.done [#allocation5], 16
    $region37: #{tpu_custom_call.1} parent=1 // pred_fallthru
      _
    %179 = vsyncpa [#allocation4], 1
    %180 = vsyncpa [#allocation7], 1
    %181 = vsyncpa [#allocation5], 1

</llo_original>
